<compile_context>
chip_gen: v5e
topology: v5e:2x2
jax: 0.10.0
libtpu: 0.0.40
codegen_flags: <defaults>
</compile_context>

<pallas_src>
import functools

import jax
import jax.numpy as jnp
from jax import lax
from jax.experimental import pallas as pl
from jax.experimental.pallas import tpu as pltpu

_LANE = 128
_SUBLANE = 8


# ---------------------------------------------------------------------------
# Hardware-aware sizing helpers
# ---------------------------------------------------------------------------
def _round_up(x, m):
    return ((x + m - 1) // m) * m


def _vmem_capacity_bytes():
    """Per-TensorCore VMEM capacity; conservative fallback if the query fails."""
    try:
        cap = int(pltpu.get_tpu_info().vmem_capacity_bytes)
        if cap > 0:
            return cap
    except Exception:
        pass
    return 64 << 20  # v7x per-TC VMEM — safe lower bound across generations


def _choose_tile_k(ab, cd, itemsize, rows_streamed):
    """K tile size: big enough to amortize per-step overhead (floor 2048 lanes),
    small enough that the K grid has ~>=4 steps (keeps DMA/compute overlapped),
    and fits a generation-aware VMEM budget."""
    cap = _vmem_capacity_bytes()
    budget = int(cap * 0.70)
    cd128 = _round_up(cd, _LANE)
    fixed = 3 * ab * ab * 4 + (2 << 20)              # acc + target bufs + slack
    avail = max(budget - fixed, 2 * rows_streamed * _LANE * itemsize)
    tk_budget = max(_LANE, (avail // (2 * rows_streamed * itemsize)) // _LANE * _LANE)
    tk_pipe = max(2048, _round_up(pl.cdiv(cd128, 4), _LANE))   # aim for >=4 K steps
    return int(max(_LANE, min(tk_budget, tk_pipe, cd128)))


def _resolve_tile_k(ab, cd, itemsize, tile_k, rows_streamed):
    if tile_k is None:
        return _choose_tile_k(ab, cd, itemsize, rows_streamed)
    cd128 = _round_up(cd, _LANE)
    tk = _round_up(int(tile_k), _LANE)               # keep lane-aligned
    return int(max(_LANE, min(tk, cd128)))


def _resolve_row_tile(ab, row_tile):
    """Row tile for the Gram output (None -> single row block)."""
    if row_tile is not None:
        tm = int(row_tile)
        if 0 < tm < ab and ab % tm == 0 and tm % _SUBLANE == 0:
            return tm
        return None
    # Auto: two row blocks when AB is large (compute-bound) so v7x's second
    # TensorCore gets half the MXU work; sequential (harmless) on v5e/v6e.
    if ab >= 256 and ab % (2 * _SUBLANE) == 0:
        return ab // 2
    return None


def _vmem_limit_bytes(rows_streamed, tk, itemsize, acc_rows, ab):
    cap = _vmem_capacity_bytes()
    feat = 2 * rows_streamed * tk * itemsize          # double-buffered feature tiles
    grams = 3 * acc_rows * ab * 4                     # accumulator + target buffers
    need = feat + grams + (4 << 20)
    return int(min(max(need, 16 << 20), int(cap * 0.80)))


def _prep_features(x_nchw, compute_dtype):
    """NCHW -> (A*B, C*D) without any padding (reshape is free); optional
    narrow-dtype cast so the HBM stream itself is bf16."""
    a, b, c, d = x_nchw.shape
    ab, cd = a * b, c * d
    feats = x_nchw.reshape(ab, cd)
    if compute_dtype is not None and feats.dtype != jnp.dtype(compute_dtype):
        feats = feats.astype(compute_dtype)
    return feats, ab, cd


def _feat_spec(block_shape, index_map, buffers):
    if buffers is None:
        return pl.BlockSpec(block_shape, index_map)
    return pl.BlockSpec(block_shape, index_map, pipeline_mode=pl.Buffered(int(buffers)))


def _mask_tail(f, k, nk, tk, tail):
    """Zero columns past the true C*D extent on the ragged last K tile.
    `tail` is static; no-op (no VPU work) when TK divides C*D."""
    if not tail:
        return f
    col = lax.broadcasted_iota(jnp.int32, f.shape, 1)
    limit = jnp.where(k == nk - 1, tail, tk)
    return jnp.where(col < limit, f, jnp.zeros_like(f))


# ---------------------------------------------------------------------------
# Kernel 1: tiled gram matrix  G = (F @ F.T) / (a*b*c*d)
#   grid = (cdiv(CD, TK),) ; output block resident across k (accumulator).
# ---------------------------------------------------------------------------
def _gram_kernel(feat_ref, g_ref, *, inv_norm, tk, tail):
    k = pl.program_id(0)
    nk = pl.num_programs(0)

    @pl.when(k == 0)
    def _init():
        g_ref[...] = jnp.zeros_like(g_ref)

    f = _mask_tail(feat_ref[...], k, nk, tk, tail)     # (AB, TK), native dtype
    g_ref[...] += lax.dot_general(
        f, f,
        dimension_numbers=(((1,), (1,)), ((), ())),    # contract last dims: F @ F^T
        preferred_element_type=jnp.float32,
    )

    @pl.when(k == nk - 1)
    def _finalize():
        g_ref[...] = g_ref[...] * inv_norm


def gram_matrix_pallas(x_nchw, *, tile_k=None, compute_dtype=None, feature_buffers=None):
    a, b, c, d = x_nchw.shape
    feats, ab, cd = _prep_features(x_nchw, compute_dtype)
    itemsize = jnp.dtype(feats.dtype).itemsize
    tk = _resolve_tile_k(ab, cd, itemsize, tile_k, ab)
    n_k = pl.cdiv(cd, tk)
    tail = cd % tk
    inv_norm = 1.0 / float(a * b * c * d)

    kernel = functools.partial(_gram_kernel, inv_norm=inv_norm, tk=tk, tail=tail)
    return pl.pallas_call(
        kernel,
        out_shape=jax.ShapeDtypeStruct((ab, ab), jnp.float32),
        grid_spec=pltpu.PrefetchScalarGridSpec(
            num_scalar_prefetch=0,
            grid=(n_k,),
            in_specs=[_feat_spec((ab, tk), lambda k: (0, k), feature_buffers)],
            out_specs=pl.BlockSpec((ab, ab), lambda k: (0, 0)),
        ),
        compiler_params=pltpu.CompilerParams(
            dimension_semantics=("arbitrary",),
            vmem_limit_bytes=_vmem_limit_bytes(ab, tk, itemsize, ab, ab),
        ),
    )(feats)


# ---------------------------------------------------------------------------
# Kernel 2a: fused StyleLoss hot path (single row block)
#   G = gram(input) ; loss = mean((G - target)^2)
# ---------------------------------------------------------------------------
def _style_loss_kernel(feat_ref, target_ref, loss_ref, acc_ref, *,
                       inv_norm, inv_count, tk, tail):
    k = pl.program_id(0)
    nk = pl.num_programs(0)

    @pl.when(k == 0)
    def _init():
        acc_ref[...] = jnp.zeros_like(acc_ref)

    f = _mask_tail(feat_ref[...], k, nk, tk, tail)
    acc_ref[...] += lax.dot_general(
        f, f,
        dimension_numbers=(((1,), (1,)), ((), ())),
        preferred_element_type=jnp.float32,
    )

    @pl.when(k == nk - 1)
    def _finalize():
        g = acc_ref[...] * inv_norm
        diff = g - target_ref[...].astype(jnp.float32)
        loss_ref[0, 0] = jnp.sum(diff * diff) * inv_count


# ---------------------------------------------------------------------------
# Kernel 2b: row-parallel fused StyleLoss (grid = (AB//TM, n_k))
#   Leading axis "parallel" -> v7x's two TensorCores split the output rows.
#   Each row block emits a partial MSE sum; the wrapper adds them.
# ---------------------------------------------------------------------------
def _style_loss_rowpar_kernel(frow_ref, fall_ref, target_ref, loss_ref, acc_ref, *,
                              inv_norm, inv_count, tk, tail):
    k = pl.program_id(1)
    nk = pl.num_programs(1)

    @pl.when(k == 0)
    def _init():
        acc_ref[...] = jnp.zeros_like(acc_ref)

    fr = _mask_tail(frow_ref[...], k, nk, tk, tail)    # (TM, TK)
    fa = _mask_tail(fall_ref[...], k, nk, tk, tail)    # (AB, TK)
    acc_ref[...] += lax.dot_general(
        fr, fa,
        dimension_numbers=(((1,), (1,)), ((), ())),    # (TM, AB) gram row block
        preferred_element_type=jnp.float32,
    )

    @pl.when(k == nk - 1)
    def _finalize():
        g = acc_ref[...] * inv_norm
        diff = g - target_ref[...].astype(jnp.float32)
        partial = jnp.sum(diff * diff) * inv_count
        loss_ref[...] = jnp.full(loss_ref.shape, partial, dtype=loss_ref.dtype)


def style_loss_forward(x_nchw, target_gram, *, tile_k=None, compute_dtype=None,
                       row_tile=None, feature_buffers=None):
    """Returns (input, loss): input passthrough + scalar MSE(gram(x), target)."""
    a, b, c, d = x_nchw.shape
    feats, ab, cd = _prep_features(x_nchw, compute_dtype)
    itemsize = jnp.dtype(feats.dtype).itemsize
    inv_norm = 1.0 / float(a * b * c * d)
    inv_count = 1.0 / float(ab * ab)
    target_gram = target_gram.astype(jnp.float32)

    tm = _resolve_row_tile(ab, row_tile)
    rows_streamed = ab + (tm if tm is not None else 0)
    tk = _resolve_tile_k(ab, cd, itemsize, tile_k, rows_streamed)
    n_k = pl.cdiv(cd, tk)
    tail = cd % tk

    if tm is None:
        kernel = functools.partial(_style_loss_kernel, inv_norm=inv_norm,
                                   inv_count=inv_count, tk=tk, tail=tail)
        loss = pl.pallas_call(
            kernel,
            out_shape=jax.ShapeDtypeStruct((1, 1), jnp.float32),
            grid_spec=pltpu.PrefetchScalarGridSpec(
                num_scalar_prefetch=0,
                grid=(n_k,),
                in_specs=[
                    _feat_spec((ab, tk), lambda k: (0, k), feature_buffers),
                    pl.BlockSpec((ab, ab), lambda k: (0, 0)),   # resident target
                ],
                out_specs=pl.BlockSpec((1, 1), lambda k: (0, 0)),
                scratch_shapes=[pltpu.VMEM((ab, ab), jnp.float32)],
            ),
            compiler_params=pltpu.CompilerParams(
                dimension_semantics=("arbitrary",),
                vmem_limit_bytes=_vmem_limit_bytes(ab, tk, itemsize, ab, ab),
            ),
        )(feats, target_gram)
        return x_nchw, loss[0, 0]

    # ---- row-parallel path ----
    n_rows = ab // tm
    kernel = functools.partial(_style_loss_rowpar_kernel, inv_norm=inv_norm,
                               inv_count=inv_count, tk=tk, tail=tail)
    partials = pl.pallas_call(
        kernel,
        out_shape=jax.ShapeDtypeStruct((n_rows, _SUBLANE, _LANE), jnp.float32),
        grid_spec=pltpu.PrefetchScalarGridSpec(
            num_scalar_prefetch=0,
            grid=(n_rows, n_k),
            in_specs=[
                _feat_spec((tm, tk), lambda i, k: (i, k), feature_buffers),  # row tile
                _feat_spec((ab, tk), lambda i, k: (0, k), feature_buffers),  # all rows
                pl.BlockSpec((tm, ab), lambda i, k: (i, 0)),                 # target rows
            ],
            out_specs=pl.BlockSpec((1, _SUBLANE, _LANE), lambda i, k: (i, 0, 0)),
            scratch_shapes=[pltpu.VMEM((tm, ab), jnp.float32)],
        ),
        compiler_params=pltpu.CompilerParams(
            dimension_semantics=("parallel", "arbitrary"),
            vmem_limit_bytes=_vmem_limit_bytes(ab + tm, tk, itemsize, tm, ab),
        ),
    )(feats, feats, target_gram)
    loss = jnp.sum(partials[:, 0, 0])
    return x_nchw, loss


class StyleLossPallas:
    """Pallas port of StyleLoss: holds the (constant) target gram, computes the
    scalar MSE loss on every call, and passes the input through unchanged."""

    def __init__(self, target_feature, *, tile_k=None, compute_dtype=None,
                 row_tile=None, feature_buffers=None):
        self.tile_k = tile_k
        self.compute_dtype = compute_dtype
        self.row_tile = row_tile
        self.feature_buffers = feature_buffers
        self.target = gram_matrix_pallas(target_feature, tile_k=tile_k,
                                         compute_dtype=compute_dtype)
        self.loss = None

    def __call__(self, x):
        out, self.loss = style_loss_forward(
            x, self.target, tile_k=self.tile_k, compute_dtype=self.compute_dtype,
            row_tile=self.row_tile, feature_buffers=self.feature_buffers)
        return out


if __name__ == "__main__":
    key = jax.random.PRNGKey(0)
    k1, k2, k3, k4, k5, k6 = jax.random.split(key, 6)

    def gram_ref(t):
        a, b, c, d = t.shape
        f = t.reshape(a * b, c * d).astype(jnp.float32)
        return (f @ f.T) / (a * b * c * d)

    # Case 1: NCHW (2, 4, 16, 16) -> F is (8, 256); tile_k=128 exercises the
    # 2-step K reduction (init / accumulate / finalize).
    target_feature = jax.random.normal(k1, (2, 4, 16, 16), dtype=jnp.float32)
    x = jax.random.normal(k2, (2, 4, 16, 16), dtype=jnp.float32)
    loss_ref = jnp.mean((gram_ref(x) - gram_ref(target_feature)) ** 2)

    module = StyleLossPallas(target_feature, tile_k=128)
    out = jax.block_until_ready(module(x))
    loss = jax.block_until_ready(module.loss)
    assert out.shape == x.shape and jnp.allclose(out, x)
    assert jnp.allclose(loss, loss_ref, rtol=1e-4, atol=1e-6), (loss, loss_ref)

    # Case 2: automatic tile selection (single K step at this tiny CD).
    module_auto = StyleLossPallas(target_feature)
    out2 = jax.block_until_ready(module_auto(x))
    loss2 = jax.block_until_ready(module_auto.loss)
    assert jnp.allclose(out2, x)
    assert jnp.allclose(loss2, loss_ref, rtol=1e-4, atol=1e-6), (loss2, loss_ref)

    # Case 3: C*D = 144 (not a multiple of 128) -> exercises the in-kernel
    # ragged-tail masking (no wrapper-side padding at all).
    tf2 = jax.random.normal(k3, (1, 3, 12, 12), dtype=jnp.float32)
    x2 = jax.random.normal(k4, (1, 3, 12, 12), dtype=jnp.float32)
    module2 = StyleLossPallas(tf2)
    out3 = jax.block_until_ready(module2(x2))
    loss3 = jax.block_until_ready(module2.loss)
    loss3_ref = jnp.mean((gram_ref(x2) - gram_ref(tf2)) ** 2)
    assert jnp.allclose(out3, x2)
    assert jnp.allclose(loss3, loss3_ref, rtol=1e-4, atol=1e-6), (loss3, loss3_ref)

    # Case 4: forced row-parallel path (grid=(2, 2), "parallel" row axis) on a
    # small shape to validate the v7x multi-TensorCore code path end to end.
    tf3 = jax.random.normal(k5, (2, 8, 16, 16), dtype=jnp.float32)
    x3 = jax.random.normal(k6, (2, 8, 16, 16), dtype=jnp.float32)
    module3 = StyleLossPallas(tf3, tile_k=128, row_tile=8)
    out4 = jax.block_until_ready(module3(x3))
    loss4 = jax.block_until_ready(module3.loss)
    loss4_ref = jnp.mean((gram_ref(x3) - gram_ref(tf3)) ** 2)
    assert jnp.allclose(out4, x3)
    assert jnp.allclose(loss4, loss4_ref, rtol=1e-4, atol=1e-6), (loss4, loss4_ref)

    # Case 5: bf16 feature stream (perf knob; numerics differ slightly from the
    # f32 PyTorch reference, so a looser tolerance is used).
    module_bf16 = StyleLossPallas(target_feature, compute_dtype=jnp.bfloat16)
    out5 = jax.block_until_ready(module_bf16(x))
    loss5 = jax.block_until_ready(module_bf16.loss)
    assert jnp.allclose(out5, x)
    assert jnp.allclose(loss5, loss_ref, rtol=1e-1, atol=1e-5), (loss5, loss_ref)

    print("KERNEL_OK")
</pallas_src>

<mosaic_0001>
module attributes {stable_mosaic.version = 11 : i64} {
  func.func @_gram_kernel(%arg0: i32, %arg1: memref<8x128xf32, #tpu.memory_space<vmem>>, %arg2: memref<8x8xf32, #tpu.memory_space<vmem>>) attributes {dimension_semantics = [#tpu.dimension_semantics<arbitrary>], iteration_bounds = array<i64: 2>, scalar_prefetch = 0 : i64, scratch_operands = 0 : i64, tpu.core_type = #tpu.core_type<tc>, window_params = [{transform_indices = @transform_0, window_bounds = array<i64: 8, 128>}, {pipeline_mode = #tpu.pipeline_mode<synchronous>, transform_indices = @transform_1, window_bounds = array<i64: 8, 8>}]} {
    %c0_i32 = arith.constant 0 : i32
    %0 = arith.cmpi eq, %arg0, %c0_i32 : i32
    %1 = arith.extui %0 : i1 to i32
    %c0_i32_0 = arith.constant 0 : i32
    %2 = arith.cmpi ne, %1, %c0_i32_0 : i32
    scf.if %2 {
      %cst_7 = arith.constant 0.000000e+00 : f32
      %11 = vector.broadcast %cst_7 : f32 to vector<8x8xf32>
      %c0_8 = arith.constant 0 : index
      %c0_9 = arith.constant 0 : index
      %12 = vector.load %arg2[%c0_8, %c0_9] : memref<8x8xf32, #tpu.memory_space<vmem>>, vector<8x8xf32>
      tpu.vector_store %arg2[%c0_8, %c0_9], %11 {strides = array<i32>} : memref<8x8xf32, #tpu.memory_space<vmem>>, vector<8x8xf32>,
    } else {
    }
    %c0 = arith.constant 0 : index
    %c0_1 = arith.constant 0 : index
    %3 = vector.load %arg1[%c0, %c0_1] : memref<8x128xf32, #tpu.memory_space<vmem>>, vector<8x128xf32>
    %c0_2 = arith.constant 0 : index
    %c0_3 = arith.constant 0 : index
    %4 = vector.load %arg2[%c0_2, %c0_3] : memref<8x8xf32, #tpu.memory_space<vmem>>, vector<8x8xf32>
    %cst = arith.constant dense<0.000000e+00> : vector<8x8xf32>
    %5 = tpu.matmul %3, %3, %cst {dimension_numbers = #tpu.dot_dimension_numbers<[1], [1], [0], [0], [0, 0, 1, 0], [], []>} : vector<8x128xf32>, vector<8x128xf32>, vector<8x8xf32> -> vector<8x8xf32>
    %6 = arith.addf %4, %5 : vector<8x8xf32>
    %c0_4 = arith.constant 0 : index
    %c0_5 = arith.constant 0 : index
    %7 = vector.load %arg2[%c0_4, %c0_5] : memref<8x8xf32, #tpu.memory_space<vmem>>, vector<8x8xf32>
    tpu.vector_store %arg2[%c0_4, %c0_5], %6 {strides = array<i32>} : memref<8x8xf32, #tpu.memory_space<vmem>>, vector<8x8xf32>,
    %c1_i32 = arith.constant 1 : i32
    %8 = arith.cmpi eq, %arg0, %c1_i32 : i32
    %9 = arith.extui %8 : i1 to i32
    %c0_i32_6 = arith.constant 0 : i32
    %10 = arith.cmpi ne, %9, %c0_i32_6 : i32
    scf.if %10 {
      %c0_7 = arith.constant 0 : index
      %c0_8 = arith.constant 0 : index
      %11 = vector.load %arg2[%c0_7, %c0_8] : memref<8x8xf32, #tpu.memory_space<vmem>>, vector<8x8xf32>
      %cst_9 = arith.constant 4.8828125E-4 : f32
      %12 = vector.broadcast %cst_9 : f32 to vector<8x8xf32>
      %13 = arith.mulf %11, %12 : vector<8x8xf32>
      %c0_10 = arith.constant 0 : index
      %c0_11 = arith.constant 0 : index
      %14 = vector.load %arg2[%c0_10, %c0_11] : memref<8x8xf32, #tpu.memory_space<vmem>>, vector<8x8xf32>
      tpu.vector_store %arg2[%c0_10, %c0_11], %13 {strides = array<i32>} : memref<8x8xf32, #tpu.memory_space<vmem>>, vector<8x8xf32>,
    } else {
    }
    return
  }
  func.func @transform_0(%arg0: i32) -> (i32, i32) {
    %c0_i32 = arith.constant 0 : i32
    %c0_i32_0 = arith.constant 0 : i32
    return %c0_i32, %arg0 : i32, i32
  }
  func.func @transform_1(%arg0: i32) -> (i32, i32) {
    %c0_i32 = arith.constant 0 : i32
    %c0_i32_0 = arith.constant 0 : i32
    %c0_i32_1 = arith.constant 0 : i32
    return %c0_i32, %c0_i32_0 : i32, i32
  }
}

</mosaic_0001>

<llo_original>
// kernel: tpu_custom_call.1
$region0: #{tpu_custom_call.1}
  #allocation0 [shape = 'u32[]', space=smem, size = 0x4, offset = 0x4, fixed_abs, tag = 'smem constant byte address 0x4 - core index']
  #allocation1 [shape = 'u32[72,128]{1,0:T(1,128)}', space=vmem, size = 0x9000, scoped, tag = 'internal scratch']
  %s0 = inlined_call_operand.hbm [shape: f32[8,256], index: 0, kind: input, shape index: {}]
  %s1 = inlined_call_operand.hbm [shape: f32[8,8], index: 1, kind: output, shape index: {}]
  %s2 = sld [smem:[#allocation0]]
  $region49: #{tpu_custom_call.1} parent=0
    _
  %s4 = ssub.s32 1, %s2
  %s5 = scalar_select 0, %s4, %s2
  $region1: #{tpu_custom_call.1} parent=0
    #allocation2 [shape = 'u8[8192]{0}', space=vmem, size = 0x2000, scoped, tag = 'input window, operand 0']
    #allocation3 [shape = 's32[2]{0}', space=sflag, size = 0x8, scoped, tag = 'scoped memory for tpu_custom_call.1']
    #allocation4 [shape = 's32[2]{0}', space=sflag, size = 0x8, scoped, tag = 'scoped memory for tpu_custom_call.1']
    #allocation5 [shape = 'u8[4096]{0}', space=vmem, size = 0x1000, scoped, tag = 'output window, operand 0, single buffered']
    %6 = vsyncpa [#allocation3], 0
    %s7 = scalar_lea.sflag [#allocation3], 1
    %8 = vsyncpa %s7, 0
    %9 = vsyncpa [#allocation4], 0
    loop: start=0, step=1, limit=4
    $region2: #{tpu_custom_call.1} parent=1 // loop_pre_header
      _
    $region3: #{tpu_custom_call.1} parent=1 // loop_header
      %s11 = sphi 0, %s15
      %p12 = scmp.ge.s32.totalorder %s11, 4
      %s21 = sphi 0, %s23
      %s24 = sphi 0, %s21
      %s25 = sphi 0, %s24
      %s41 = sphi 0, %s25
      %s45 = sphi 0, %s45
      %s47 = sphi 0, %s45
      %s48 = sphi 0, %s47
      %s62 = sphi 0, %s48
    $region4: #{tpu_custom_call.1} parent=1 // loop_header_branch
      %14 = sbr.rel (%p12) target = $region8
    $region5: #{tpu_custom_call.1} parent=1 // loop_body
      %s16 = ssub.s32 %s11, 1
      %s17 = ssub.s32 %s11, 2
      %s18 = sadd.s32 %s11, 1
      %s19 = ssub.s32 %s11, %s18
      %p20 = scmp.eq.s32.totalorder %s19, 0
      %s22 = sadd.s32 %s21, 1
      %s23 = scalar_select %p20, %s21, %s22
      %p26 = pneg %p20
      %p27 = scmp.eq.s32.totalorder %s11, 1
      %p28 = por %p26, %p27
      %p29 = scmp.ne.s32.totalorder %s21, %s24
      %p30 = scmp.eq.s32.totalorder %s11, 0
      %p31 = por %p29, %p30
      %p32 = scmp.ne.s32.totalorder %s21, %s24
      %p33 = scmp.eq.s32.totalorder %s16, 1
      %p34 = por %p32, %p33
      %p35 = scmp.ne.s32.totalorder %s24, %s25
      %p36 = scmp.eq.s32.totalorder %s16, 0
      %p37 = por %p35, %p36
      %p38 = scmp.ne.s32.totalorder %s24, %s25
      %p39 = scmp.eq.s32.totalorder %s17, 1
      %p40 = por %p38, %p39
      %p42 = scmp.ne.s32.totalorder %s25, %s41
      %p43 = scmp.eq.s32.totalorder %s17, 0
      %p44 = por %p42, %p43
      %s46 = sadd.s32 %s45, 1
      %p49 = scmp.eq.s32.totalorder %s11, 1
      %p50 = scmp.ne.s32.totalorder %s45, %s47
      %p51 = scmp.eq.s32.totalorder %s11, 0
      %p52 = por %p50, %p51
      %p53 = scmp.ne.s32.totalorder %s45, %s47
      %p54 = scmp.eq.s32.totalorder %s16, 1
      %p55 = por %p53, %p54
      %p56 = scmp.ne.s32.totalorder %s47, %s48
      %p57 = scmp.eq.s32.totalorder %s16, 0
      %p58 = por %p56, %p57
      %p59 = scmp.ne.s32.totalorder %s47, %s48
      %p60 = scmp.eq.s32.totalorder %s17, 1
      %p61 = por %p59, %p60
      %p63 = scmp.ne.s32.totalorder %s48, %s62
      %p64 = scmp.eq.s32.totalorder %s17, 0
      %p65 = por %p63, %p64
      %p66 = scmp.le.s32.totalorder 1, %s11
      %p67 = scmp.lt.s32.totalorder %s11, 3
      %p68 = pnand %p66, %p67
      %p69 = pneg %p68
      // Predicated region
      $region9: #{tpu_custom_call.1} parent=5 // pred_check
        _
      $region10: #{tpu_custom_call.1} parent=5 // pred_check_branch
        %71 = sbr.rel (%p68) target = $region12
      $region11: #{tpu_custom_call.1} parent=5 // pred_region
        %s72 = ssub.s32 %s11, 1
      $region12: #{tpu_custom_call.1} parent=5 // pred_fallthru
        _
      %p73 = scmp.lt.s32.totalorder %s11, 2
      // Predicated region
      $region13: #{tpu_custom_call.1} parent=5 // pred_check
        %p74 = pneg %p73
      $region14: #{tpu_custom_call.1} parent=5 // pred_check_branch
        %76 = sbr.rel (%p74) target = $region16
      $region15: #{tpu_custom_call.1} parent=5 // pred_region
        // Predicated region
        $region17: #{tpu_custom_call.1} parent=15 // pred_check
          %p77 = pneg %p31
        $region18: #{tpu_custom_call.1} parent=15 // pred_check_branch
          %79 = sbr.rel (%p77) target = $region20
        $region19: #{tpu_custom_call.1} parent=15 // pred_region
          %s80 = sand.u32 %s21, 1
          %s81 = scalar_lea.sflag [#allocation3], %s80
          %s82 = sand.u32 %s21, 1
          %s83 = smul.addr %s82, 8
          %s84 = scalar_lea.vmem [#allocation2], %s83
          %86 = vsyncadd %s81, 0
          %s87 = smul.addr %s11, 8
          %s88 = scalar_lea.hbm %s0, %s87
          %s90 = sshll.u32 %s88, 4
          %s91 = int_to_ptr.hbm [resolvable:$true] %s90
          %s92 = sshll.u32 %s84, 4
          %s93 = int_to_ptr.vmem [resolvable:$true] %s92
          %95 = dma.hbm_to_vmem [thread:$0]  %s91, 128, %s93, %s81
        $region20: #{tpu_custom_call.1} parent=15 // pred_fallthru
          _
      $region16: #{tpu_custom_call.1} parent=5 // pred_fallthru
        _
      %p96 = scmp.le.s32.totalorder 1, %s11
      %p97 = scmp.lt.s32.totalorder %s11, 3
      %p98 = pnand %p96, %p97
      %p99 = pneg %p98
      // Predicated region
      $region21: #{tpu_custom_call.1} parent=5 // pred_check
        _
      $region22: #{tpu_custom_call.1} parent=5 // pred_check_branch
        %101 = sbr.rel (%p98) target = $region24
      $region23: #{tpu_custom_call.1} parent=5 // pred_region
        %s102 = ssub.s32 %s11, 1
        %s103 = sand.u32 %s24, 1
        %s104 = scalar_lea.sflag [#allocation3], %s103
        %s105 = sand.u32 %s24, 1
        %s106 = smul.addr %s105, 8
        %s107 = scalar_lea.vmem [#allocation2], %s106
        // Predicated region
        $region25: #{tpu_custom_call.1} parent=23 // pred_check
          %p108 = pneg %p37
        $region26: #{tpu_custom_call.1} parent=23 // pred_check_branch
          %110 = sbr.rel (%p108) target = $region28
        $region27: #{tpu_custom_call.1} parent=23 // pred_region
          %112 = dma.done %s104, 128
        $region28: #{tpu_custom_call.1} parent=23 // pred_fallthru
          _
        %s113 = sand.u32 %s24, 1
        %s114 = scalar_lea.sflag [#allocation3], %s113
        %s115 = sand.u32 %s24, 1
        %s116 = smul.addr %s115, 8
        %s117 = scalar_lea.vmem [#allocation2], %s116
        %p118 = pneg %p37
        %p119 = pneg %p34
        %p120 = pneg %p58
        %p121 = pneg %p55
        %p122 = scmp.eq.s32.totalorder %s16, 0
        // Predicated region
        $region29: #{tpu_custom_call.1} parent=23 // pred_check
          %p123 = pneg %p122
        $region30: #{tpu_custom_call.1} parent=23 // pred_check_branch
          %125 = sbr.rel (%p123) target = $region32
        $region31: #{tpu_custom_call.1} parent=23 // pred_region
          %vm126 = vcmask 64512
          %127 = vst.msk [vmem:[#allocation5] sm:$0xff] %vm126, 0.0
        $region32: #{tpu_custom_call.1} parent=23 // pred_fallthru
          _
        %v128 = vld [vmem:[%s107] sm:$0xff]
        %v129 = vld [vmem:[#allocation5] sm:$0xff]
        %130 = vmatpush.xpose.msra.mxu0 0.0
        %131 = vmatpush.xpose.msra.mxu0 0.0
        %132 = vmatpush.xpose.msra.mxu0 0.0
        %133 = vmatpush.xpose.msra.mxu0 0.0
        %134 = vmatpush.xpose.msra.mxu0 0.0
        %135 = vmatpush.xpose.msra.mxu0 0.0
        %136 = vmatpush.xpose.msra.mxu0 0.0
        %137 = vmatpush.xpose.msra.mxu0 0.0
        %138 = vmatpush.xpose.msra.mxu0 0.0
        %139 = vmatpush.xpose.msra.mxu0 0.0
        %140 = vmatpush.xpose.msra.mxu0 0.0
        %141 = vmatpush.xpose.msra.mxu0 0.0
        %142 = vmatpush.xpose.msra.mxu0 0.0
        %143 = vmatpush.xpose.msra.mxu0 0.0
        %144 = vmatpush.xpose.msra.mxu0 0.0
        %145 = vmatpush.xpose.msra.mxu0 %v128
        %146 = vmatmul.f32.gmra.mxu0 %v128
        %v147 = vpop.f32.mrf.mxu0
        %v148 = vadd.f32 0.0, %v147
        %149 = vdwg.mxu0
        %v150 = vadd.f32 %v129, %v148
        %vm151 = vcmask 64512
        %152 = vst.msk [vmem:[#allocation5] sm:$0xff] %vm151, %v150
        %p153 = scmp.eq.s32.totalorder %s16, 1
        // Predicated region
        $region33: #{tpu_custom_call.1} parent=23 // pred_check
          %p154 = pneg %p153
        $region34: #{tpu_custom_call.1} parent=23 // pred_check_branch
          %156 = sbr.rel (%p154) target = $region36
        $region35: #{tpu_custom_call.1} parent=23 // pred_region
          %v157 = vld [vmem:[#allocation5] sm:$0xff]
          %v158 = vmul.f32 %v157, 0.00048828125
          %159 = vst.msk [vmem:[#allocation5] sm:$0xff] %vm151, %v158
        $region36: #{tpu_custom_call.1} parent=23 // pred_fallthru
          _
        // Predicated region
        $region37: #{tpu_custom_call.1} parent=23 // pred_check
          %p160 = pneg %p55
        $region38: #{tpu_custom_call.1} parent=23 // pred_check_branch
          %162 = sbr.rel (%p160) target = $region40
        $region39: #{tpu_custom_call.1} parent=23 // pred_region
          %164 = vsyncadd [#allocation4], 0
          %s166 = sshll.u32 [#allocation5], 4
          %s167 = int_to_ptr.vmem [resolvable:$true] %s166
          %s168 = sshll.u32 %s1, 4
          %s169 = int_to_ptr.hbm [resolvable:$true] %s168
          %171 = dma.vmem_to_hbm [thread:$0]  %s167, 128, %s169, [#allocation4]
        $region40: #{tpu_custom_call.1} parent=23 // pred_fallthru
          _
        // Predicated region
        $region41: #{tpu_custom_call.1} parent=23 // pred_check
          %p172 = pneg %p55
        $region42: #{tpu_custom_call.1} parent=23 // pred_check_branch
          %174 = sbr.rel (%p172) target = $region44
        $region43: #{tpu_custom_call.1} parent=23 // pred_region
          %176 = dma.done [#allocation4], 128
        $region44: #{tpu_custom_call.1} parent=23 // pred_fallthru
          _
      $region24: #{tpu_custom_call.1} parent=5 // pred_fallthru
        _
      %p177 = scmp.le.s32.totalorder 2, %s11
      // Predicated region
      $region45: #{tpu_custom_call.1} parent=5 // pred_check
        %p178 = pneg %p177
      $region46: #{tpu_custom_call.1} parent=5 // pred_check_branch
        %180 = sbr.rel (%p178) target = $region48
      $region47: #{tpu_custom_call.1} parent=5 // pred_region
        %s181 = ssub.s32 %s11, 2
      $region48: #{tpu_custom_call.1} parent=5 // pred_fallthru
        _
    $region6: #{tpu_custom_call.1} parent=1 // loop_footer
      %s15 = sadd.s32 1, %s11
    $region7: #{tpu_custom_call.1} parent=1 // loop_footer_branch
      %10 = sbr.rel target = $region3
    $region8: #{tpu_custom_call.1} parent=1 // loop_exit
      _
    %182 = vsyncpa [#allocation3], 1
    %s183 = scalar_lea.sflag [#allocation3], 1
    %184 = vsyncpa %s183, 1
    %185 = vsyncpa [#allocation4], 1
    %s186 = scalar_lea.sflag [#allocation4], 1
    %187 = vsyncpa %s186, 1

</llo_original>
